<compile_context>
chip_gen: v7x
topology: tpu7x:2x2x1
jax: 0.10.0
libtpu: 0.0.40
codegen_flags: <defaults>
</compile_context>

<pallas_src>
import functools

import jax
import jax.numpy as jnp
from jax.experimental import pallas as pl
from jax.experimental.pallas import tpu as pltpu


def _inv_res_shuffle_kernel(x_ref, w1_ref, t1_ref, wd_ref, t2_ref, w3_ref, t3_ref,
                            mask_ref, out_ref, *, c_in, w_img, n):
    """Fused inverted-residual block over a `chunk` of images.

    x_ref   : (chunk, c_in, n)     flattened (H*W) input images, lane-dense
    w1_ref  : (hidden, c_in)       expand 1x1 weight, BN1 scale folded in
    t1_ref  : (hidden, 1)          BN1 shift
    wd_ref  : (hidden, 9)          3x3 depthwise taps (kh,kw row-major), BN2 scale folded
    t2_ref  : (hidden, 1)          BN2 shift
    w3_ref  : (oup, hidden)        project 1x1 weight, BN3 scale folded in
    t3_ref  : (oup, 1)             BN3 shift
    mask_ref: (9, n)               per-tap validity mask (0.0 past the image border)
    out_ref : (chunk, c_in+oup, n) concat([x, y]) along channels
    """
    w1 = w1_ref[...]
    w3 = w3_ref[...]
    wd = wd_ref[...]
    t1 = t1_ref[...]
    t2 = t2_ref[...]
    t3 = t3_ref[...]
    mask9 = mask_ref[...]
    chunk = x_ref.shape[0]

    for bi in range(chunk):                       # static unroll: amortizes step overhead
        x = x_ref[bi]                             # (c_in, n)

        # --- expand: 1x1 conv + BN1 + ReLU6 (BN1 scale folded into w1) ---
        h = jnp.dot(w1, x, preferred_element_type=jnp.float32)
        h = jnp.clip(h + t1, 0.0, 6.0)            # (hidden, n), stays in vregs

        # --- 3x3 depthwise (stride 1, pad 1): 8 lane rolls + boundary masks ---
        acc = wd[:, 4:5] * h                      # center tap: no shift, mask == 1
        tap = 0
        for di in (-1, 0, 1):
            for dj in (-1, 0, 1):
                if di == 0 and dj == 0:
                    tap += 1
                    continue
                src_off = di * w_img + dj         # neighbour offset in flattened image
                shifted = pltpu.roll(h, (-src_off) % n, axis=1)
                acc = acc + wd[:, tap:tap + 1] * (shifted * mask9[tap:tap + 1, :])
                tap += 1
        h2 = jnp.clip(acc + t2, 0.0, 6.0)

        # --- project: 1x1 conv + BN3 (linear bottleneck, no ReLU) ---
        y = jnp.dot(w3, h2, preferred_element_type=jnp.float32) + t3

        # --- channel concat([x, y]) written straight into the aligned output block ---
        out_ref[bi, :c_in, :] = x.astype(out_ref.dtype)
        out_ref[bi, c_in:, :] = y.astype(out_ref.dtype)


def _pick_chunk(batch):
    """Largest chunk <= 8 that divides the batch while keeping >= 2 grid steps
    (so both v7x TensorCores get work via the 'parallel' grid axis)."""
    if batch < 2:
        return 1
    for c in (8, 4, 2):
        if batch % c == 0 and batch // c >= 2:
            return c
    return 1


def inverted_residual_shuffle(x, params, *, eps=1e-5):
    """InvertedResidual_shuffle forward (stride=1, expand_ratio != 1 branch).

    x: (B, inp, H, W) float32.  Returns (B, inp + oup, H, W).
    BatchNorm layers are applied in inference mode (running statistics).
    """
    # TODO(synk): stride=2 / expand_ratio==1 branches (strided depthwise, no concat)
    # and training-mode BN (batch statistics) are not implemented in this kernel.
    B, c_in, H, W = x.shape
    N = H * W
    w1 = params["w1"]                 # (hidden, inp)
    wd = params["wd"]                 # (hidden, 1, 3, 3)  torch depthwise layout
    w3 = params["w3"]                 # (oup, hidden)
    hidden = w1.shape[0]
    oup = w3.shape[0]
    c_out = c_in + oup

    # Fold eval-mode BatchNorm: scale goes into the conv weights (row-wise, weights are
    # tiny so this is free); only the per-channel shift remains in the kernel.
    def fold(g, b, m, v):
        s = g * jax.lax.rsqrt(v + eps)
        return s.astype(jnp.float32), (b - m * s).astype(jnp.float32)

    s1, t1 = fold(params["bn1_g"], params["bn1_b"], params["bn1_m"], params["bn1_v"])
    s2, t2 = fold(params["bn2_g"], params["bn2_b"], params["bn2_m"], params["bn2_v"])
    s3, t3 = fold(params["bn3_g"], params["bn3_b"], params["bn3_m"], params["bn3_v"])
    w1_eff = (w1 * s1[:, None]).astype(jnp.float32)
    wd_eff = (wd.reshape(hidden, 9) * s2[:, None]).astype(jnp.float32)
    w3_eff = (w3 * s3[:, None]).astype(jnp.float32)
    t1 = t1.reshape(hidden, 1)
    t2 = t2.reshape(hidden, 1)
    t3 = t3.reshape(oup, 1)

    # Per-tap validity masks for the flattened 3x3 depthwise (zero-padding semantics):
    # lane rolls wrap across row/image boundaries; the mask zeroes those contributions.
    idx = jnp.arange(N, dtype=jnp.int32)
    row, col = idx // W, idx % W
    masks = []
    for di in (-1, 0, 1):
        rv = (row + di >= 0) & (row + di < H)
        for dj in (-1, 0, 1):
            cv = (col + dj >= 0) & (col + dj < W)
            masks.append((rv & cv).astype(jnp.float32))
    mask9 = jnp.stack(masks, axis=0)               # (9, N)

    x_flat = x.reshape(B, c_in, N)                  # free reshape (no HBM pass)
    chunk = _pick_chunk(B)
    grid = (B // chunk,)

    kernel = functools.partial(_inv_res_shuffle_kernel, c_in=c_in, w_img=W, n=N)
    flops = 2 * (hidden * c_in + 9 * hidden + oup * hidden) * B * N
    bytes_accessed = 4 * (B * c_in * N + B * c_out * N
                          + w1_eff.size + wd_eff.size + w3_eff.size
                          + t1.size + t2.size + t3.size + mask9.size)

    out_flat = pl.pallas_call(
        kernel,
        out_shape=jax.ShapeDtypeStruct((B, c_out, N), x.dtype),
        grid_spec=pltpu.PrefetchScalarGridSpec(
            num_scalar_prefetch=0,
            grid=grid,
            in_specs=[
                pl.BlockSpec((chunk, c_in, N), lambda b: (b, 0, 0)),   # x (flat, lane-dense)
                pl.BlockSpec((hidden, c_in), lambda b: (0, 0)),        # w1 (BN1-scaled)
                pl.BlockSpec((hidden, 1), lambda b: (0, 0)),           # BN1 shift
                pl.BlockSpec((hidden, 9), lambda b: (0, 0)),           # dw taps (BN2-scaled)
                pl.BlockSpec((hidden, 1), lambda b: (0, 0)),           # BN2 shift
                pl.BlockSpec((oup, hidden), lambda b: (0, 0)),         # w3 (BN3-scaled)
                pl.BlockSpec((oup, 1), lambda b: (0, 0)),              # BN3 shift
                pl.BlockSpec((9, N), lambda b: (0, 0)),                # tap boundary masks
            ],
            out_specs=pl.BlockSpec((chunk, c_out, N), lambda b: (b, 0, 0)),
        ),
        compiler_params=pltpu.CompilerParams(dimension_semantics=("parallel",)),
        cost_estimate=pl.CostEstimate(flops=flops, transcendentals=0,
                                      bytes_accessed=bytes_accessed),
    )(x_flat, w1_eff, t1, wd_eff, t2, w3_eff, t3, mask9)

    return out_flat.reshape(B, c_out, H, W)         # free reshape


def _reference(x, params, eps=1e-5):
    """Pure-JAX reference mirroring the PyTorch forward (eval-mode BN)."""
    def bn(h, g, b, m, v):
        s = (g * jax.lax.rsqrt(v + eps))[None, :, None, None]
        return (h - m[None, :, None, None]) * s + b[None, :, None, None]

    hidden = params["w1"].shape[0]
    h = jnp.einsum('kc,bchw->bkhw', params["w1"], x)
    h = jnp.clip(bn(h, params["bn1_g"], params["bn1_b"], params["bn1_m"], params["bn1_v"]), 0.0, 6.0)
    h = jax.lax.conv_general_dilated(
        h, params["wd"], window_strides=(1, 1), padding=((1, 1), (1, 1)),
        dimension_numbers=('NCHW', 'OIHW', 'NCHW'), feature_group_count=hidden)
    h = jnp.clip(bn(h, params["bn2_g"], params["bn2_b"], params["bn2_m"], params["bn2_v"]), 0.0, 6.0)
    y = jnp.einsum('ok,bkhw->bohw', params["w3"], h)
    y = bn(y, params["bn3_g"], params["bn3_b"], params["bn3_m"], params["bn3_v"])
    return jnp.concatenate([x, y], axis=1)


if __name__ == "__main__":
    # InvertedResidual_shuffle(inp=16, oup=16, stride=1, expand_ratio=2)
    #   -> hidden_dim = 32, use_res_connect = True (channel-concat output).
    B, inp, oup, H, W = 2, 16, 16, 16, 16
    expand_ratio = 2
    hidden = inp * expand_ratio

    key = jax.random.PRNGKey(0)
    ks = jax.random.split(key, 16)
    x = jax.random.normal(ks[0], (B, inp, H, W), dtype=jnp.float32)

    def bn_params(k, c):
        k1, k2, k3, k4 = jax.random.split(k, 4)
        return (1.0 + 0.1 * jax.random.normal(k1, (c,), jnp.float32),    # gamma
                0.1 * jax.random.normal(k2, (c,), jnp.float32),           # beta
                0.1 * jax.random.normal(k3, (c,), jnp.float32),           # running_mean
                0.5 + jnp.abs(jax.random.normal(k4, (c,), jnp.float32)))  # running_var

    g1, b1, m1, v1 = bn_params(ks[4], hidden)
    g2, b2, m2, v2 = bn_params(ks[5], hidden)
    g3, b3, m3, v3 = bn_params(ks[6], oup)

    params = {
        "w1": 0.2 * jax.random.normal(ks[1], (hidden, inp), jnp.float32),
        "wd": 0.2 * jax.random.normal(ks[2], (hidden, 1, 3, 3), jnp.float32),
        "w3": 0.2 * jax.random.normal(ks[3], (oup, hidden), jnp.float32),
        "bn1_g": g1, "bn1_b": b1, "bn1_m": m1, "bn1_v": v1,
        "bn2_g": g2, "bn2_b": b2, "bn2_m": m2, "bn2_v": v2,
        "bn3_g": g3, "bn3_b": b3, "bn3_m": m3, "bn3_v": v3,
    }

    out = jax.jit(inverted_residual_shuffle)(x, params)
    jax.block_until_ready(out)

    ref = _reference(x, params)
    assert out.shape == (B, inp + oup, H, W)
    err = float(jnp.max(jnp.abs(out - ref)))
    assert jnp.allclose(out, ref, atol=2e-4, rtol=2e-4), err

    print("KERNEL_OK")
</pallas_src>

<mosaic_0001>
module attributes {stable_mosaic.version = 11 : i64} {
  func.func @_inv_res_shuffle_kernel(%arg0: i32, %arg1: memref<1x16x256xf32, #tpu.memory_space<vmem>>, %arg2: memref<32x16xf32, #tpu.memory_space<vmem>>, %arg3: memref<32x1xf32, #tpu.memory_space<vmem>>, %arg4: memref<32x9xf32, #tpu.memory_space<vmem>>, %arg5: memref<32x1xf32, #tpu.memory_space<vmem>>, %arg6: memref<16x32xf32, #tpu.memory_space<vmem>>, %arg7: memref<16x1xf32, #tpu.memory_space<vmem>>, %arg8: memref<9x256xf32, #tpu.memory_space<vmem>>, %arg9: memref<1x32x256xf32, #tpu.memory_space<vmem>>) attributes {dimension_semantics = [#tpu.dimension_semantics<parallel>], iteration_bounds = array<i64: 2>, scalar_prefetch = 0 : i64, scratch_operands = 0 : i64, tpu.core_type = #tpu.core_type<tc>, window_params = [{transform_indices = @transform_0, window_bounds = array<i64: 1, 16, 256>}, {pipeline_mode = #tpu.pipeline_mode<synchronous>, transform_indices = @transform_1, window_bounds = array<i64: 32, 16>}, {pipeline_mode = #tpu.pipeline_mode<synchronous>, transform_indices = @transform_2, window_bounds = array<i64: 32, 1>}, {pipeline_mode = #tpu.pipeline_mode<synchronous>, transform_indices = @transform_3, window_bounds = array<i64: 32, 9>}, {pipeline_mode = #tpu.pipeline_mode<synchronous>, transform_indices = @transform_4, window_bounds = array<i64: 32, 1>}, {pipeline_mode = #tpu.pipeline_mode<synchronous>, transform_indices = @transform_5, window_bounds = array<i64: 16, 32>}, {pipeline_mode = #tpu.pipeline_mode<synchronous>, transform_indices = @transform_6, window_bounds = array<i64: 16, 1>}, {pipeline_mode = #tpu.pipeline_mode<synchronous>, transform_indices = @transform_7, window_bounds = array<i64: 9, 256>}, {transform_indices = @transform_8, window_bounds = array<i64: 1, 32, 256>}]} {
    %c0 = arith.constant 0 : index
    %c0_0 = arith.constant 0 : index
    %0 = vector.load %arg2[%c0, %c0_0] : memref<32x16xf32, #tpu.memory_space<vmem>>, vector<32x16xf32>
    %c0_1 = arith.constant 0 : index
    %c0_2 = arith.constant 0 : index
    %1 = vector.load %arg6[%c0_1, %c0_2] : memref<16x32xf32, #tpu.memory_space<vmem>>, vector<16x32xf32>
    %c0_3 = arith.constant 0 : index
    %c0_4 = arith.constant 0 : index
    %2 = vector.load %arg4[%c0_3, %c0_4] : memref<32x9xf32, #tpu.memory_space<vmem>>, vector<32x9xf32>
    %c0_5 = arith.constant 0 : index
    %c0_6 = arith.constant 0 : index
    %3 = vector.load %arg3[%c0_5, %c0_6] : memref<32x1xf32, #tpu.memory_space<vmem>>, vector<32x1xf32>
    %c0_7 = arith.constant 0 : index
    %c0_8 = arith.constant 0 : index
    %4 = vector.load %arg5[%c0_7, %c0_8] : memref<32x1xf32, #tpu.memory_space<vmem>>, vector<32x1xf32>
    %c0_9 = arith.constant 0 : index
    %c0_10 = arith.constant 0 : index
    %5 = vector.load %arg7[%c0_9, %c0_10] : memref<16x1xf32, #tpu.memory_space<vmem>>, vector<16x1xf32>
    %c0_11 = arith.constant 0 : index
    %c0_12 = arith.constant 0 : index
    %6 = vector.load %arg8[%c0_11, %c0_12] : memref<9x256xf32, #tpu.memory_space<vmem>>, vector<9x256xf32>
    %c0_13 = arith.constant 0 : index
    %c0_14 = arith.constant 0 : index
    %c0_15 = arith.constant 0 : index
    %7 = vector.load %arg1[%c0_13, %c0_14, %c0_15] : memref<1x16x256xf32, #tpu.memory_space<vmem>>, vector<1x16x256xf32>
    %8 = vector.shape_cast %7 : vector<1x16x256xf32> to vector<16x256xf32>
    %cst = arith.constant dense<0.000000e+00> : vector<32x256xf32>
    %9 = tpu.matmul %0, %8, %cst {dimension_numbers = #tpu.dot_dimension_numbers<[1], [0], [0], [1], [0, 0, 1, 1], [], []>} : vector<32x16xf32>, vector<16x256xf32>, vector<32x256xf32> -> vector<32x256xf32>
    %10 = vector.broadcast %3 : vector<32x1xf32> to vector<32x256xf32>
    %11 = arith.addf %9, %10 : vector<32x256xf32>
    %cst_16 = arith.constant 0.000000e+00 : f32
    %cst_17 = arith.constant 6.000000e+00 : f32
    %12 = vector.broadcast %cst_16 : f32 to vector<32x256xf32>
    %13 = arith.maximumf %12, %11 : vector<32x256xf32>
    %14 = vector.broadcast %cst_17 : f32 to vector<32x256xf32>
    %15 = arith.minimumf %14, %13 : vector<32x256xf32>
    %16 = vector.extract_strided_slice %2 {offsets = [0, 4], sizes = [32, 1], strides = [1, 1]} : vector<32x9xf32> to vector<32x1xf32>
    %17 = vector.broadcast %16 : vector<32x1xf32> to vector<32x256xf32>
    %18 = arith.mulf %17, %15 : vector<32x256xf32>
    %c17_i32 = arith.constant 17 : i32
    %19 = tpu.dynamic_rotate %15 by %c17_i32 dim 1 : vector<32x256xf32>, i32 -> vector<32x256xf32>
    %20 = vector.extract_strided_slice %2 {offsets = [0, 0], sizes = [32, 1], strides = [1, 1]} : vector<32x9xf32> to vector<32x1xf32>
    %21 = vector.extract_strided_slice %6 {offsets = [0, 0], sizes = [1, 256], strides = [1, 1]} : vector<9x256xf32> to vector<1x256xf32>
    %22 = vector.broadcast %21 : vector<1x256xf32> to vector<32x256xf32>
    %23 = arith.mulf %19, %22 : vector<32x256xf32>
    %24 = vector.broadcast %20 : vector<32x1xf32> to vector<32x256xf32>
    %25 = arith.mulf %24, %23 : vector<32x256xf32>
    %26 = arith.addf %18, %25 : vector<32x256xf32>
    %c16_i32 = arith.constant 16 : i32
    %27 = tpu.dynamic_rotate %15 by %c16_i32 dim 1 : vector<32x256xf32>, i32 -> vector<32x256xf32>
    %28 = vector.extract_strided_slice %2 {offsets = [0, 1], sizes = [32, 1], strides = [1, 1]} : vector<32x9xf32> to vector<32x1xf32>
    %29 = vector.extract_strided_slice %6 {offsets = [1, 0], sizes = [1, 256], strides = [1, 1]} : vector<9x256xf32> to vector<1x256xf32>
    %30 = vector.broadcast %29 : vector<1x256xf32> to vector<32x256xf32>
    %31 = arith.mulf %27, %30 : vector<32x256xf32>
    %32 = vector.broadcast %28 : vector<32x1xf32> to vector<32x256xf32>
    %33 = arith.mulf %32, %31 : vector<32x256xf32>
    %34 = arith.addf %26, %33 : vector<32x256xf32>
    %c15_i32 = arith.constant 15 : i32
    %35 = tpu.dynamic_rotate %15 by %c15_i32 dim 1 : vector<32x256xf32>, i32 -> vector<32x256xf32>
    %36 = vector.extract_strided_slice %2 {offsets = [0, 2], sizes = [32, 1], strides = [1, 1]} : vector<32x9xf32> to vector<32x1xf32>
    %37 = vector.extract_strided_slice %6 {offsets = [2, 0], sizes = [1, 256], strides = [1, 1]} : vector<9x256xf32> to vector<1x256xf32>
    %38 = vector.broadcast %37 : vector<1x256xf32> to vector<32x256xf32>
    %39 = arith.mulf %35, %38 : vector<32x256xf32>
    %40 = vector.broadcast %36 : vector<32x1xf32> to vector<32x256xf32>
    %41 = arith.mulf %40, %39 : vector<32x256xf32>
    %42 = arith.addf %34, %41 : vector<32x256xf32>
    %c1_i32 = arith.constant 1 : i32
    %43 = tpu.dynamic_rotate %15 by %c1_i32 dim 1 : vector<32x256xf32>, i32 -> vector<32x256xf32>
    %44 = vector.extract_strided_slice %2 {offsets = [0, 3], sizes = [32, 1], strides = [1, 1]} : vector<32x9xf32> to vector<32x1xf32>
    %45 = vector.extract_strided_slice %6 {offsets = [3, 0], sizes = [1, 256], strides = [1, 1]} : vector<9x256xf32> to vector<1x256xf32>
    %46 = vector.broadcast %45 : vector<1x256xf32> to vector<32x256xf32>
    %47 = arith.mulf %43, %46 : vector<32x256xf32>
    %48 = vector.broadcast %44 : vector<32x1xf32> to vector<32x256xf32>
    %49 = arith.mulf %48, %47 : vector<32x256xf32>
    %50 = arith.addf %42, %49 : vector<32x256xf32>
    %c255_i32 = arith.constant 255 : i32
    %51 = tpu.dynamic_rotate %15 by %c255_i32 dim 1 : vector<32x256xf32>, i32 -> vector<32x256xf32>
    %52 = vector.extract_strided_slice %2 {offsets = [0, 5], sizes = [32, 1], strides = [1, 1]} : vector<32x9xf32> to vector<32x1xf32>
    %53 = vector.extract_strided_slice %6 {offsets = [5, 0], sizes = [1, 256], strides = [1, 1]} : vector<9x256xf32> to vector<1x256xf32>
    %54 = vector.broadcast %53 : vector<1x256xf32> to vector<32x256xf32>
    %55 = arith.mulf %51, %54 : vector<32x256xf32>
    %56 = vector.broadcast %52 : vector<32x1xf32> to vector<32x256xf32>
    %57 = arith.mulf %56, %55 : vector<32x256xf32>
    %58 = arith.addf %50, %57 : vector<32x256xf32>
    %c241_i32 = arith.constant 241 : i32
    %59 = tpu.dynamic_rotate %15 by %c241_i32 dim 1 : vector<32x256xf32>, i32 -> vector<32x256xf32>
    %60 = vector.extract_strided_slice %2 {offsets = [0, 6], sizes = [32, 1], strides = [1, 1]} : vector<32x9xf32> to vector<32x1xf32>
    %61 = vector.extract_strided_slice %6 {offsets = [6, 0], sizes = [1, 256], strides = [1, 1]} : vector<9x256xf32> to vector<1x256xf32>
    %62 = vector.broadcast %61 : vector<1x256xf32> to vector<32x256xf32>
    %63 = arith.mulf %59, %62 : vector<32x256xf32>
    %64 = vector.broadcast %60 : vector<32x1xf32> to vector<32x256xf32>
    %65 = arith.mulf %64, %63 : vector<32x256xf32>
    %66 = arith.addf %58, %65 : vector<32x256xf32>
    %c240_i32 = arith.constant 240 : i32
    %67 = tpu.dynamic_rotate %15 by %c240_i32 dim 1 : vector<32x256xf32>, i32 -> vector<32x256xf32>
    %68 = vector.extract_strided_slice %2 {offsets = [0, 7], sizes = [32, 1], strides = [1, 1]} : vector<32x9xf32> to vector<32x1xf32>
    %69 = vector.extract_strided_slice %6 {offsets = [7, 0], sizes = [1, 256], strides = [1, 1]} : vector<9x256xf32> to vector<1x256xf32>
    %70 = vector.broadcast %69 : vector<1x256xf32> to vector<32x256xf32>
    %71 = arith.mulf %67, %70 : vector<32x256xf32>
    %72 = vector.broadcast %68 : vector<32x1xf32> to vector<32x256xf32>
    %73 = arith.mulf %72, %71 : vector<32x256xf32>
    %74 = arith.addf %66, %73 : vector<32x256xf32>
    %c239_i32 = arith.constant 239 : i32
    %75 = tpu.dynamic_rotate %15 by %c239_i32 dim 1 : vector<32x256xf32>, i32 -> vector<32x256xf32>
    %76 = vector.extract_strided_slice %2 {offsets = [0, 8], sizes = [32, 1], strides = [1, 1]} : vector<32x9xf32> to vector<32x1xf32>
    %77 = vector.extract_strided_slice %6 {offsets = [8, 0], sizes = [1, 256], strides = [1, 1]} : vector<9x256xf32> to vector<1x256xf32>
    %78 = vector.broadcast %77 : vector<1x256xf32> to vector<32x256xf32>
    %79 = arith.mulf %75, %78 : vector<32x256xf32>
    %80 = vector.broadcast %76 : vector<32x1xf32> to vector<32x256xf32>
    %81 = arith.mulf %80, %79 : vector<32x256xf32>
    %82 = arith.addf %74, %81 : vector<32x256xf32>
    %83 = vector.broadcast %4 : vector<32x1xf32> to vector<32x256xf32>
    %84 = arith.addf %82, %83 : vector<32x256xf32>
    %cst_18 = arith.constant 0.000000e+00 : f32
    %cst_19 = arith.constant 6.000000e+00 : f32
    %85 = vector.broadcast %cst_18 : f32 to vector<32x256xf32>
    %86 = arith.maximumf %85, %84 : vector<32x256xf32>
    %87 = vector.broadcast %cst_19 : f32 to vector<32x256xf32>
    %88 = arith.minimumf %87, %86 : vector<32x256xf32>
    %cst_20 = arith.constant dense<0.000000e+00> : vector<16x256xf32>
    %89 = tpu.matmul %1, %88, %cst_20 {dimension_numbers = #tpu.dot_dimension_numbers<[1], [0], [0], [1], [0, 0, 1, 1], [], []>} : vector<16x32xf32>, vector<32x256xf32>, vector<16x256xf32> -> vector<16x256xf32>
    %90 = vector.broadcast %5 : vector<16x1xf32> to vector<16x256xf32>
    %91 = arith.addf %89, %90 : vector<16x256xf32>
    %c0_21 = arith.constant 0 : index
    %c0_22 = arith.constant 0 : index
    %c0_23 = arith.constant 0 : index
    %92 = vector.load %arg9[%c0_21, %c0_22, %c0_23] : memref<1x32x256xf32, #tpu.memory_space<vmem>>, vector<1x16x256xf32>
    %93 = vector.shape_cast %92 : vector<1x16x256xf32> to vector<16x256xf32>
    %94 = vector.shape_cast %8 : vector<16x256xf32> to vector<1x16x256xf32>
    tpu.vector_store %arg9[%c0_21, %c0_22, %c0_23], %94 {strides = array<i32>} : memref<1x32x256xf32, #tpu.memory_space<vmem>>, vector<1x16x256xf32>,
    %c0_24 = arith.constant 0 : index
    %c16 = arith.constant 16 : index
    %c0_25 = arith.constant 0 : index
    %95 = vector.load %arg9[%c0_24, %c16, %c0_25] : memref<1x32x256xf32, #tpu.memory_space<vmem>>, vector<1x16x256xf32>
    %96 = vector.shape_cast %95 : vector<1x16x256xf32> to vector<16x256xf32>
    %97 = vector.shape_cast %91 : vector<16x256xf32> to vector<1x16x256xf32>
    tpu.vector_store %arg9[%c0_24, %c16, %c0_25], %97 {strides = array<i32>} : memref<1x32x256xf32, #tpu.memory_space<vmem>>, vector<1x16x256xf32>,
    return
  }
  func.func @transform_0(%arg0: i32) -> (i32, i32, i32) {
    %c0_i32 = arith.constant 0 : i32
    %c0_i32_0 = arith.constant 0 : i32
    %c0_i32_1 = arith.constant 0 : i32
    return %arg0, %c0_i32, %c0_i32_0 : i32, i32, i32
  }
  func.func @transform_1(%arg0: i32) -> (i32, i32) {
    %c0_i32 = arith.constant 0 : i32
    %c0_i32_0 = arith.constant 0 : i32
    %c0_i32_1 = arith.constant 0 : i32
    return %c0_i32, %c0_i32_0 : i32, i32
  }
  func.func @transform_2(%arg0: i32) -> (i32, i32) {
    %c0_i32 = arith.constant 0 : i32
    %c0_i32_0 = arith.constant 0 : i32
    %c0_i32_1 = arith.constant 0 : i32
    return %c0_i32, %c0_i32_0 : i32, i32
  }
  func.func @transform_3(%arg0: i32) -> (i32, i32) {
    %c0_i32 = arith.constant 0 : i32
    %c0_i32_0 = arith.constant 0 : i32
    %c0_i32_1 = arith.constant 0 : i32
    return %c0_i32, %c0_i32_0 : i32, i32
  }
  func.func @transform_4(%arg0: i32) -> (i32, i32) {
    %c0_i32 = arith.constant 0 : i32
    %c0_i32_0 = arith.constant 0 : i32
    %c0_i32_1 = arith.constant 0 : i32
    return %c0_i32, %c0_i32_0 : i32, i32
  }
  func.func @transform_5(%arg0: i32) -> (i32, i32) {
    %c0_i32 = arith.constant 0 : i32
    %c0_i32_0 = arith.constant 0 : i32
    %c0_i32_1 = arith.constant 0 : i32
    return %c0_i32, %c0_i32_0 : i32, i32
  }
  func.func @transform_6(%arg0: i32) -> (i32, i32) {
    %c0_i32 = arith.constant 0 : i32
    %c0_i32_0 = arith.constant 0 : i32
    %c0_i32_1 = arith.constant 0 : i32
    return %c0_i32, %c0_i32_0 : i32, i32
  }
  func.func @transform_7(%arg0: i32) -> (i32, i32) {
    %c0_i32 = arith.constant 0 : i32
    %c0_i32_0 = arith.constant 0 : i32
    %c0_i32_1 = arith.constant 0 : i32
    return %c0_i32, %c0_i32_0 : i32, i32
  }
  func.func @transform_8(%arg0: i32) -> (i32, i32, i32) {
    %c0_i32 = arith.constant 0 : i32
    %c0_i32_0 = arith.constant 0 : i32
    %c0_i32_1 = arith.constant 0 : i32
    return %arg0, %c0_i32, %c0_i32_0 : i32, i32, i32
  }
}

</mosaic_0001>

<llo_original>
// kernel: inverted_residual_shuffle.1
$region0: #{inverted_residual_shuffle.1}
  #allocation0 [shape = 'u32[]', space=smem, size = 0x4, offset = 0x4, fixed_abs, tag = 'smem constant byte address 0x4 - core index']
  #allocation1 [shape = 'u32[144,128]{1,0:T(1,128)}', space=vmem, size = 0x12000, scoped, tag = 'internal scratch']
  %s0 = inlined_call_operand.vmem [shape: f32[2,16,256], index: 0, kind: input, shape index: {}]
  %s1 = inlined_call_operand.vmem [shape: f32[32,16], index: 1, kind: input, shape index: {}]
  %s2 = inlined_call_operand.vmem [shape: f32[32,1], index: 2, kind: input, shape index: {}]
  %s3 = inlined_call_operand.vmem [shape: f32[32,9], index: 3, kind: input, shape index: {}]
  %s4 = inlined_call_operand.vmem [shape: f32[32,1], index: 4, kind: input, shape index: {}]
  %s5 = inlined_call_operand.vmem [shape: f32[16,32], index: 5, kind: input, shape index: {}]
  %s6 = inlined_call_operand.vmem [shape: f32[16,1], index: 6, kind: input, shape index: {}]
  %s7 = inlined_call_operand.vmem [shape: f32[9,256], index: 7, kind: input, shape index: {}]
  %s8 = inlined_call_operand.vmem [shape: f32[2,32,256], index: 8, kind: output, shape index: {}]
  %s9 = sld [smem:[#allocation0]]
  $region65: #{inverted_residual_shuffle.1} parent=0
    _
  %s11 = ssub.s32 1, %s9
  %s12 = scalar_select 0, %s11, %s9
  loop: start=0, step=1, limit=4
  $region2: #{inverted_residual_shuffle.1} parent=0 // loop_pre_header
    _
  $region3: #{inverted_residual_shuffle.1} parent=0 // loop_header
    %s14 = sphi 0, %s18
    %p15 = scmp.ge.s32.totalorder %s14, 4
    %s24 = sphi 0, %s26
    %s27 = sphi 0, %s24
    %s28 = sphi 0, %s27
    %s44 = sphi 0, %s28
    %s48 = sphi 0, %s48
    %s50 = sphi 0, %s48
    %s51 = sphi 0, %s50
    %s65 = sphi 0, %s51
    %s69 = sphi 0, %s69
    %s71 = sphi 0, %s69
    %s72 = sphi 0, %s71
    %s86 = sphi 0, %s72
    %s90 = sphi 0, %s90
    %s92 = sphi 0, %s90
    %s93 = sphi 0, %s92
    %s107 = sphi 0, %s93
    %s111 = sphi 0, %s111
    %s113 = sphi 0, %s111
    %s114 = sphi 0, %s113
    %s128 = sphi 0, %s114
    %s132 = sphi 0, %s132
    %s134 = sphi 0, %s132
    %s135 = sphi 0, %s134
    %s149 = sphi 0, %s135
    %s153 = sphi 0, %s153
    %s155 = sphi 0, %s153
    %s156 = sphi 0, %s155
    %s170 = sphi 0, %s156
    %s174 = sphi 0, %s174
    %s176 = sphi 0, %s174
    %s177 = sphi 0, %s176
    %s191 = sphi 0, %s177
    %s197 = sphi 0, %s199
    %s200 = sphi 0, %s197
    %s201 = sphi 0, %s200
    %s217 = sphi 0, %s201
  $region4: #{inverted_residual_shuffle.1} parent=0 // loop_header_branch
    %17 = sbr.rel (%p15) target = $region8
  $region5: #{inverted_residual_shuffle.1} parent=0 // loop_body
    %s19 = ssub.s32 %s14, 1
    %s20 = ssub.s32 %s14, 2
    %s21 = sadd.s32 %s14, 1
    %s22 = ssub.s32 %s14, %s21
    %p23 = scmp.eq.s32.totalorder %s22, 0
    %s25 = sadd.s32 %s24, 1
    %s26 = scalar_select %p23, %s24, %s25
    %p29 = pneg %p23
    %p30 = scmp.eq.s32.totalorder %s14, 1
    %p31 = por %p29, %p30
    %p32 = scmp.ne.s32.totalorder %s24, %s27
    %p33 = scmp.eq.s32.totalorder %s14, 0
    %p34 = por %p32, %p33
    %p35 = scmp.ne.s32.totalorder %s24, %s27
    %p36 = scmp.eq.s32.totalorder %s19, 1
    %p37 = por %p35, %p36
    %p38 = scmp.ne.s32.totalorder %s27, %s28
    %p39 = scmp.eq.s32.totalorder %s19, 0
    %p40 = por %p38, %p39
    %p41 = scmp.ne.s32.totalorder %s27, %s28
    %p42 = scmp.eq.s32.totalorder %s20, 1
    %p43 = por %p41, %p42
    %p45 = scmp.ne.s32.totalorder %s28, %s44
    %p46 = scmp.eq.s32.totalorder %s20, 0
    %p47 = por %p45, %p46
    %s49 = sadd.s32 %s48, 1
    %p52 = scmp.eq.s32.totalorder %s14, 1
    %p53 = scmp.ne.s32.totalorder %s48, %s50
    %p54 = scmp.eq.s32.totalorder %s14, 0
    %p55 = por %p53, %p54
    %p56 = scmp.ne.s32.totalorder %s48, %s50
    %p57 = scmp.eq.s32.totalorder %s19, 1
    %p58 = por %p56, %p57
    %p59 = scmp.ne.s32.totalorder %s50, %s51
    %p60 = scmp.eq.s32.totalorder %s19, 0
    %p61 = por %p59, %p60
    %p62 = scmp.ne.s32.totalorder %s50, %s51
    %p63 = scmp.eq.s32.totalorder %s20, 1
    %p64 = por %p62, %p63
    %p66 = scmp.ne.s32.totalorder %s51, %s65
    %p67 = scmp.eq.s32.totalorder %s20, 0
    %p68 = por %p66, %p67
    %s70 = sadd.s32 %s69, 1
    %p73 = scmp.eq.s32.totalorder %s14, 1
    %p74 = scmp.ne.s32.totalorder %s69, %s71
    %p75 = scmp.eq.s32.totalorder %s14, 0
    %p76 = por %p74, %p75
    %p77 = scmp.ne.s32.totalorder %s69, %s71
    %p78 = scmp.eq.s32.totalorder %s19, 1
    %p79 = por %p77, %p78
    %p80 = scmp.ne.s32.totalorder %s71, %s72
    %p81 = scmp.eq.s32.totalorder %s19, 0
    %p82 = por %p80, %p81
    %p83 = scmp.ne.s32.totalorder %s71, %s72
    %p84 = scmp.eq.s32.totalorder %s20, 1
    %p85 = por %p83, %p84
    %p87 = scmp.ne.s32.totalorder %s72, %s86
    %p88 = scmp.eq.s32.totalorder %s20, 0
    %p89 = por %p87, %p88
    %s91 = sadd.s32 %s90, 1
    %p94 = scmp.eq.s32.totalorder %s14, 1
    %p95 = scmp.ne.s32.totalorder %s90, %s92
    %p96 = scmp.eq.s32.totalorder %s14, 0
    %p97 = por %p95, %p96
    %p98 = scmp.ne.s32.totalorder %s90, %s92
    %p99 = scmp.eq.s32.totalorder %s19, 1
    %p100 = por %p98, %p99
    %p101 = scmp.ne.s32.totalorder %s92, %s93
    %p102 = scmp.eq.s32.totalorder %s19, 0
    %p103 = por %p101, %p102
    %p104 = scmp.ne.s32.totalorder %s92, %s93
    %p105 = scmp.eq.s32.totalorder %s20, 1
    %p106 = por %p104, %p105
    %p108 = scmp.ne.s32.totalorder %s93, %s107
    %p109 = scmp.eq.s32.totalorder %s20, 0
    %p110 = por %p108, %p109
    %s112 = sadd.s32 %s111, 1
    %p115 = scmp.eq.s32.totalorder %s14, 1
    %p116 = scmp.ne.s32.totalorder %s111, %s113
    %p117 = scmp.eq.s32.totalorder %s14, 0
    %p118 = por %p116, %p117
    %p119 = scmp.ne.s32.totalorder %s111, %s113
    %p120 = scmp.eq.s32.totalorder %s19, 1
    %p121 = por %p119, %p120
    %p122 = scmp.ne.s32.totalorder %s113, %s114
    %p123 = scmp.eq.s32.totalorder %s19, 0
    %p124 = por %p122, %p123
    %p125 = scmp.ne.s32.totalorder %s113, %s114
    %p126 = scmp.eq.s32.totalorder %s20, 1
    %p127 = por %p125, %p126
    %p129 = scmp.ne.s32.totalorder %s114, %s128
    %p130 = scmp.eq.s32.totalorder %s20, 0
    %p131 = por %p129, %p130
    %s133 = sadd.s32 %s132, 1
    %p136 = scmp.eq.s32.totalorder %s14, 1
    %p137 = scmp.ne.s32.totalorder %s132, %s134
    %p138 = scmp.eq.s32.totalorder %s14, 0
    %p139 = por %p137, %p138
    %p140 = scmp.ne.s32.totalorder %s132, %s134
    %p141 = scmp.eq.s32.totalorder %s19, 1
    %p142 = por %p140, %p141
    %p143 = scmp.ne.s32.totalorder %s134, %s135
    %p144 = scmp.eq.s32.totalorder %s19, 0
    %p145 = por %p143, %p144
    %p146 = scmp.ne.s32.totalorder %s134, %s135
    %p147 = scmp.eq.s32.totalorder %s20, 1
    %p148 = por %p146, %p147
    %p150 = scmp.ne.s32.totalorder %s135, %s149
    %p151 = scmp.eq.s32.totalorder %s20, 0
    %p152 = por %p150, %p151
    %s154 = sadd.s32 %s153, 1
    %p157 = scmp.eq.s32.totalorder %s14, 1
    %p158 = scmp.ne.s32.totalorder %s153, %s155
    %p159 = scmp.eq.s32.totalorder %s14, 0
    %p160 = por %p158, %p159
    %p161 = scmp.ne.s32.totalorder %s153, %s155
    %p162 = scmp.eq.s32.totalorder %s19, 1
    %p163 = por %p161, %p162
    %p164 = scmp.ne.s32.totalorder %s155, %s156
    %p165 = scmp.eq.s32.totalorder %s19, 0
    %p166 = por %p164, %p165
    %p167 = scmp.ne.s32.totalorder %s155, %s156
    %p168 = scmp.eq.s32.totalorder %s20, 1
    %p169 = por %p167, %p168
    %p171 = scmp.ne.s32.totalorder %s156, %s170
    %p172 = scmp.eq.s32.totalorder %s20, 0
    %p173 = por %p171, %p172
    %s175 = sadd.s32 %s174, 1
    %p178 = scmp.eq.s32.totalorder %s14, 1
    %p179 = scmp.ne.s32.totalorder %s174, %s176
    %p180 = scmp.eq.s32.totalorder %s14, 0
    %p181 = por %p179, %p180
    %p182 = scmp.ne.s32.totalorder %s174, %s176
    %p183 = scmp.eq.s32.totalorder %s19, 1
    %p184 = por %p182, %p183
    %p185 = scmp.ne.s32.totalorder %s176, %s177
    %p186 = scmp.eq.s32.totalorder %s19, 0
    %p187 = por %p185, %p186
    %p188 = scmp.ne.s32.totalorder %s176, %s177
    %p189 = scmp.eq.s32.totalorder %s20, 1
    %p190 = por %p188, %p189
    %p192 = scmp.ne.s32.totalorder %s177, %s191
    %p193 = scmp.eq.s32.totalorder %s20, 0
    %p194 = por %p192, %p193
    %s195 = ssub.s32 %s14, %s21
    %p196 = scmp.eq.s32.totalorder %s195, 0
    %s198 = sadd.s32 %s197, 1
    %s199 = scalar_select %p196, %s197, %s198
    %p202 = pneg %p196
    %p203 = scmp.eq.s32.totalorder %s14, 1
    %p204 = por %p202, %p203
    %p205 = scmp.ne.s32.totalorder %s197, %s200
    %p206 = scmp.eq.s32.totalorder %s14, 0
    %p207 = por %p205, %p206
    %p208 = scmp.ne.s32.totalorder %s197, %s200
    %p209 = scmp.eq.s32.totalorder %s19, 1
    %p210 = por %p208, %p209
    %p211 = scmp.ne.s32.totalorder %s200, %s201
    %p212 = scmp.eq.s32.totalorder %s19, 0
    %p213 = por %p211, %p212
    %p214 = scmp.ne.s32.totalorder %s200, %s201
    %p215 = scmp.eq.s32.totalorder %s20, 1
    %p216 = por %p214, %p215
    %p218 = scmp.ne.s32.totalorder %s201, %s217
    %p219 = scmp.eq.s32.totalorder %s20, 0
    %p220 = por %p218, %p219
    %p221 = scmp.le.s32.totalorder 1, %s14
    %p222 = scmp.lt.s32.totalorder %s14, 3
    %p223 = pnand %p221, %p222
    %p224 = pneg %p223
    // Predicated region
    $region9: #{inverted_residual_shuffle.1} parent=5 // pred_check
      _
    $region10: #{inverted_residual_shuffle.1} parent=5 // pred_check_branch
      %226 = sbr.rel (%p223) target = $region12
    $region11: #{inverted_residual_shuffle.1} parent=5 // pred_region
      %s227 = ssub.s32 %s14, 1
      // Predicated region
      $region13: #{inverted_residual_shuffle.1} parent=11 // pred_check
        %p228 = pneg %p61
      $region14: #{inverted_residual_shuffle.1} parent=11 // pred_check_branch
        %230 = sbr.rel (%p228) target = $region16
      $region15: #{inverted_residual_shuffle.1} parent=11 // pred_region
        _
      $region16: #{inverted_residual_shuffle.1} parent=11 // pred_fallthru
        _
      // Predicated region
      $region17: #{inverted_residual_shuffle.1} parent=11 // pred_check
        %p231 = pneg %p82
      $region18: #{inverted_residual_shuffle.1} parent=11 // pred_check_branch
        %233 = sbr.rel (%p231) target = $region20
      $region19: #{inverted_residual_shuffle.1} parent=11 // pred_region
        _
      $region20: #{inverted_residual_shuffle.1} parent=11 // pred_fallthru
        _
      // Predicated region
      $region21: #{inverted_residual_shuffle.1} parent=11 // pred_check
        %p234 = pneg %p103
      $region22: #{inverted_residual_shuffle.1} parent=11 // pred_check_branch
        %236 = sbr.rel (%p234) target = $region24
      $region23: #{inverted_residual_shuffle.1} parent=11 // pred_region
        _
      $region24: #{inverted_residual_shuffle.1} parent=11 // pred_fallthru
        _
      // Predicated region
      $region25: #{inverted_residual_shuffle.1} parent=11 // pred_check
        %p237 = pneg %p124
      $region26: #{inverted_residual_shuffle.1} parent=11 // pred_check_branch
        %239 = sbr.rel (%p237) target = $region28
      $region27: #{inverted_residual_shuffle.1} parent=11 // pred_region
        _
      $region28: #{inverted_residual_shuffle.1} parent=11 // pred_fallthru
        _
      // Predicated region
      $region29: #{inverted_residual_shuffle.1} parent=11 // pred_check
        %p240 = pneg %p145
      $region30: #{inverted_residual_shuffle.1} parent=11 // pred_check_branch
        %242 = sbr.rel (%p240) target = $region32
      $region31: #{inverted_residual_shuffle.1} parent=11 // pred_region
        _
      $region32: #{inverted_residual_shuffle.1} parent=11 // pred_fallthru
        _
      // Predicated region
      $region33: #{inverted_residual_shuffle.1} parent=11 // pred_check
        %p243 = pneg %p166
      $region34: #{inverted_residual_shuffle.1} parent=11 // pred_check_branch
        %245 = sbr.rel (%p243) target = $region36
      $region35: #{inverted_residual_shuffle.1} parent=11 // pred_region
        _
      $region36: #{inverted_residual_shuffle.1} parent=11 // pred_fallthru
        _
      // Predicated region
      $region37: #{inverted_residual_shuffle.1} parent=11 // pred_check
        %p246 = pneg %p187
      $region38: #{inverted_residual_shuffle.1} parent=11 // pred_check_branch
        %248 = sbr.rel (%p246) target = $region40
      $region39: #{inverted_residual_shuffle.1} parent=11 // pred_region
        _
      $region40: #{inverted_residual_shuffle.1} parent=11 // pred_fallthru
        _
    $region12: #{inverted_residual_shuffle.1} parent=5 // pred_fallthru
      _
    %p249 = scmp.lt.s32.totalorder %s14, 2
    // Predicated region
    $region41: #{inverted_residual_shuffle.1} parent=5 // pred_check
      %p250 = pneg %p249
    $region42: #{inverted_residual_shuffle.1} parent=5 // pred_check_branch
      %252 = sbr.rel (%p250) target = $region44
    $region43: #{inverted_residual_shuffle.1} parent=5 // pred_region
      // Predicated region
      $region45: #{inverted_residual_shuffle.1} parent=43 // pred_check
        %p253 = pneg %p34
      $region46: #{inverted_residual_shuffle.1} parent=43 // pred_check_branch
        %255 = sbr.rel (%p253) target = $region48
      $region47: #{inverted_residual_shuffle.1} parent=43 // pred_region
        %p256 = scmp.lt.s32.totalorder %s14, 1
        %s257 = scalar_select %p256, %s14, 1
        %s258 = smul.addr %s257, 4
        %s259 = smul.addr %s258, 8
        %s260 = scalar_lea.vmem %s0, %s259
      $region48: #{inverted_residual_shuffle.1} parent=43 // pred_fallthru
        _
    $region44: #{inverted_residual_shuffle.1} parent=5 // pred_fallthru
      _
    %p261 = scmp.le.s32.totalorder 1, %s14
    %p262 = scmp.lt.s32.totalorder %s14, 3
    %p263 = pnand %p261, %p262
    %p264 = pneg %p263
    // Predicated region
    $region49: #{inverted_residual_shuffle.1} parent=5 // pred_check
      _
    $region50: #{inverted_residual_shuffle.1} parent=5 // pred_check_branch
      %266 = sbr.rel (%p263) target = $region52
    $region51: #{inverted_residual_shuffle.1} parent=5 // pred_region
      %s267 = ssub.s32 %s14, 1
      %p268 = scmp.lt.s32.totalorder %s19, 1
      %s269 = scalar_select %p268, %s19, 1
      %s270 = smul.addr %s269, 4
      %s271 = smul.addr %s270, 8
      %s272 = scalar_lea.vmem %s0, %s271
      %p273 = pneg %p40
      %p274 = pneg %p37
      %p275 = pneg %p61
      %p276 = pneg %p58
      %p277 = pneg %p82
      %p278 = pneg %p79
      %p279 = pneg %p103
      %p280 = pneg %p100
      %p281 = pneg %p124
      %p282 = pneg %p121
      %p283 = pneg %p145
      %p284 = pneg %p142
      %p285 = pneg %p166
      %p286 = pneg %p163
      %p287 = pneg %p187
      %p288 = pneg %p184
      %p289 = pneg %p213
      %p290 = pneg %p210
      %p291 = scmp.lt.s32.totalorder %s19, 1
      %s292 = scalar_select %p291, %s19, 1
      %s293 = smul.addr %s292, 8
      %s294 = smul.addr %s293, 8
      %s295 = scalar_lea.vmem %s8, %s294
      %p296 = scmp.lt.s32.totalorder %s19, 1
      %s297 = scalar_select %p296, %s19, 1
      %s298 = smul.addr %s297, 4
      %s299 = smul.addr %s298, 8
      %s300 = scalar_lea.vmem %s0, %s299
      %p301 = scmp.lt.s32.totalorder %s19, 1
      %s302 = scalar_select %p301, %s19, 1
      %s303 = smul.addr %s302, 8
      %s304 = smul.addr %s303, 8
      %s305 = scalar_lea.vmem %s8, %s304
      %v306 = vld [vmem:[%s1] sm:$0xff]
      %v307 = vld [vmem:[%s1 + $0x8] sm:$0xff]
      %v308 = vld [vmem:[%s1 + $0x10] sm:$0xff]
      %v309 = vld [vmem:[%s1 + $0x18] sm:$0xff]
      %v310 = vld [vmem:[%s5] sm:$0xff]
      %v311 = vld [vmem:[%s5 + $0x8] sm:$0xff]
      %v312 = vld [vmem:[%s3] sm:$0xff]
      %v313 = vld [vmem:[%s3 + $0x8] sm:$0xff]
      %v314 = vld [vmem:[%s3 + $0x10] sm:$0xff]
      %v315 = vld [vmem:[%s3 + $0x18] sm:$0xff]
      %v316 = vld [vmem:[%s2] sm:$0xff]
      %v317 = vld [vmem:[%s2 + $0x8] sm:$0xff]
      %v318 = vld [vmem:[%s2 + $0x10] sm:$0xff]
      %v319 = vld [vmem:[%s2 + $0x18] sm:$0xff]
      %v320 = vld [vmem:[%s4] sm:$0xff]
      %v321 = vld [vmem:[%s4 + $0x8] sm:$0xff]
      %v322 = vld [vmem:[%s4 + $0x10] sm:$0xff]
      %v323 = vld [vmem:[%s4 + $0x18] sm:$0xff]
      %v324 = vld [vmem:[%s6] sm:$0xff]
      %v325 = vld [vmem:[%s6 + $0x8] sm:$0xff]
      %v326 = vld [vmem:[%s7] sm:$0xff]
      %v327 = vld [vmem:[%s7 + $0x8] sm:$0xff]
      %v328 = vld [vmem:[%s7 + $0x10] sm:$0x1]
      %v329 = vld [vmem:[%s7 + $0x18] sm:$0x1]
      %v330 = vld [vmem:[%s300] sm:$0xff]
      %v331 = vld [vmem:[%s300 + $0x8] sm:$0xff]
      %v332 = vld [vmem:[%s300 + $0x10] sm:$0xff]
      %v333 = vld [vmem:[%s300 + $0x18] sm:$0xff]
      %335 = vset.pattern.permute.xlu0 0
      %336 = vperm.xlu0 %335, %v316
      %v337 = vpop.permute.xlu0 %336
      %340 = vset.pattern.permute.xlu0 0
      %341 = vperm.xlu0 %340, %v317
      %v342 = vpop.permute.xlu0 %341
      %345 = vset.pattern.permute.xlu0 0
      %346 = vperm.xlu0 %345, %v318
      %v347 = vpop.permute.xlu0 %346
      %350 = vset.pattern.permute.xlu0 0
      %351 = vperm.xlu0 %350, %v319
      %v352 = vpop.permute.xlu0 %351
      %vm354 = vcmask 130048
      %v356 = vsel %vm354, %v306, 0
      %v359 = vsel %vm354, %v307, 0
      %v362 = vsel %vm354, %v308, 0
      %v365 = vsel %vm354, %v309, 0
      %367 = vmatprep.subr.mxu0 %v331
      %368 = vmatpush1.msra.mxu0 %v330
      %369 = vmatprep.subr.mxu0 %v333
      %370 = vmatpush1.msra.mxu0 %v332
      %371 = vmatprep.subr.mxu0 0.0
      %372 = vmatpush1.msra.mxu0 0.0
      %373 = vmatprep.subr.mxu0 0.0
      %374 = vmatpush1.msra.mxu0 0.0
      %375 = vmatprep.subr.mxu0 0.0
      %376 = vmatpush1.msra.mxu0 0.0
      %377 = vmatprep.subr.mxu0 0.0
      %378 = vmatpush1.msra.mxu0 0.0
      %379 = vmatprep.subr.mxu0 0.0
      %380 = vmatpush1.msra.mxu0 0.0
      %381 = vmatprep.subr.mxu0 0.0
      %382 = vmatpush1.msra.mxu0 0.0
      %383 = vmatprep.subr.mxu0 0.0
      %384 = vmatpush1.msra.mxu0 0.0
      %385 = vmatprep.subr.mxu0 0.0
      %386 = vmatpush1.msra.mxu0 0.0
      %387 = vmatprep.subr.mxu0 0.0
      %388 = vmatpush1.msra.mxu0 0.0
      %389 = vmatprep.subr.mxu0 0.0
      %390 = vmatpush1.msra.mxu0 0.0
      %391 = vmatprep.subr.mxu0 0.0
      %392 = vmatpush1.msra.mxu0 0.0
      %393 = vmatprep.subr.mxu0 0.0
      %394 = vmatpush1.msra.mxu0 0.0
      %395 = vmatprep.subr.mxu0 0.0
      %396 = vmatpush1.msra.mxu0 0.0
      %397 = vmatprep.subr.mxu0 0.0
      %398 = vmatpush1.msra.mxu0 0.0
      %399 = vmatprep.subr.mxu0 0.0
      %400 = vmatpush1.msra.mxu0 0.0
      %401 = vmatprep.subr.mxu0 0.0
      %402 = vmatpush1.msra.mxu0 0.0
      %403 = vmatprep.subr.mxu0 0.0
      %404 = vmatpush1.msra.mxu0 0.0
      %405 = vmatprep.subr.mxu0 0.0
      %406 = vmatpush1.msra.mxu0 0.0
      %407 = vmatprep.subr.mxu0 0.0
      %408 = vmatpush1.msra.mxu0 0.0
      %409 = vmatprep.subr.mxu0 0.0
      %410 = vmatpush1.msra.mxu0 0.0
      %411 = vmatprep.subr.mxu0 0.0
      %412 = vmatpush1.msra.mxu0 0.0
      %413 = vmatprep.subr.mxu0 0.0
      %414 = vmatpush1.msra.mxu0 0.0
      %415 = vmatprep.subr.mxu0 0.0
      %416 = vmatpush1.msra.mxu0 0.0
      %417 = vmatprep.subr.mxu0 0.0
      %418 = vmatpush1.msra.mxu0 0.0
      %419 = vmatprep.subr.mxu0 0.0
      %420 = vmatpush1.msra.mxu0 0.0
      %421 = vmatprep.subr.mxu0 0.0
      %422 = vmatpush1.msra.mxu0 0.0
      %423 = vmatprep.subr.mxu0 0.0
      %424 = vmatpush1.msra.mxu0 0.0
      %425 = vmatprep.subr.mxu0 0.0
      %426 = vmatpush1.msra.mxu0 0.0
      %427 = vmatprep.subr.mxu0 0.0
      %428 = vmatpush1.msra.mxu0 0.0
      %429 = vmatprep.subr.mxu0 0.0
      %430 = vmatpush1.msra.mxu0 0.0
      %431 = vmatprep.mubr.f32.mxu0 0.0
      %432 = vmatmul.mubr.f32.gmra.mrb[0].mxu0 %v356
      %v433 = vpop.f32.mrb[0].mxu0
      %v434 = vadd.f32 %v337, %v433
      %v435 = vpop.f32.mrb[0].mxu0
      %v436 = vadd.f32 %v337, %v435
      %437 = vmatprep.mubr.f32.mxu0 0.0
      %438 = vmatmul.mubr.f32.gmra.mrb[0].mxu0 %v359
      %v439 = vpop.f32.mrb[0].mxu0
      %v440 = vadd.f32 %v342, %v439
      %v441 = vpop.f32.mrb[0].mxu0
      %v442 = vadd.f32 %v342, %v441
      %443 = vmatprep.mubr.f32.mxu0 0.0
      %444 = vmatmul.mubr.f32.gmra.mrb[0].mxu0 %v362
      %v445 = vpop.f32.mrb[0].mxu0
      %v446 = vadd.f32 %v347, %v445
      %v447 = vpop.f32.mrb[0].mxu0
      %v448 = vadd.f32 %v347, %v447
      %449 = vmatprep.mubr.f32.mxu0 0.0
      %450 = vmatmul.mubr.f32.gmra.mrb[0].mxu0 %v365
      %v451 = vpop.f32.mrb[0].mxu0
      %v452 = vadd.f32 %v352, %v451
      %v453 = vpop.f32.mrb[0].mxu0
      %v454 = vadd.f32 %v352, %v453
      %455 = vdwg.mxu0
      %v456 = vmax.f32 %v434, 0.0
      %v457 = vmax.f32 %v436, 0.0
      %v458 = vmax.f32 %v440, 0.0
      %v459 = vmax.f32 %v442, 0.0
      %v460 = vmax.f32 %v446, 0.0
      %v461 = vmax.f32 %v448, 0.0
      %v462 = vmax.f32 %v452, 0.0
      %v463 = vmax.f32 %v454, 0.0
      %v464 = vmin.f32 %v456, 6.0
      %v465 = vmin.f32 %v457, 6.0
      %v466 = vmin.f32 %v458, 6.0
      %v467 = vmin.f32 %v459, 6.0
      %v468 = vmin.f32 %v460, 6.0
      %v469 = vmin.f32 %v461, 6.0
      %v470 = vmin.f32 %v462, 6.0
      %v471 = vmin.f32 %v463, 6.0
      %473 = vset.pattern.permute.xlu0 4
      %474 = vperm.xlu0 %473, %v312
      %v475 = vpop.permute.xlu0 %474
      %478 = vset.pattern.permute.xlu0 4
      %479 = vperm.xlu0 %478, %v313
      %v480 = vpop.permute.xlu0 %479
      %483 = vset.pattern.permute.xlu0 4
      %484 = vperm.xlu0 %483, %v314
      %v485 = vpop.permute.xlu0 %484
      %488 = vset.pattern.permute.xlu0 4
      %489 = vperm.xlu0 %488, %v315
      %v490 = vpop.permute.xlu0 %489
      %v492 = vmul.f32 %v475, %v464
      %v493 = vmul.f32 %v475, %v465
      %v494 = vmul.f32 %v480, %v466
      %v495 = vmul.f32 %v480, %v467
      %v496 = vmul.f32 %v485, %v468
      %v497 = vmul.f32 %v485, %v469
      %v498 = vmul.f32 %v490, %v470
      %v499 = vmul.f32 %v490, %v471
      %500 = vrot.lane.b32.xlu0 %v464, 17
      %v501 = vpop.permute.xlu0 %500
      %502 = vrot.lane.b32.xlu0 %v466, 17
      %v503 = vpop.permute.xlu0 %502
      %504 = vrot.lane.b32.xlu0 %v468, 17
      %v505 = vpop.permute.xlu0 %504
      %506 = vrot.lane.b32.xlu0 %v470, 17
      %v507 = vpop.permute.xlu0 %506
      %508 = vrot.lane.b32.xlu0 %v465, 17
      %v509 = vpop.permute.xlu0 %508
      %510 = vrot.lane.b32.xlu0 %v467, 17
      %v511 = vpop.permute.xlu0 %510
      %512 = vrot.lane.b32.xlu0 %v469, 17
      %v513 = vpop.permute.xlu0 %512
      %514 = vrot.lane.b32.xlu0 %v471, 17
      %v515 = vpop.permute.xlu0 %514
      %v516 = vlaneseq
      %v517 = vand.u32 %v516, 127
      %vm518 = vcmp.lt.s32.totalorder %v517, 17
      %v519 = vsel %vm518, %v501, %v509
      %v520 = vsel %vm518, %v503, %v511
      %v521 = vsel %vm518, %v505, %v513
      %v522 = vsel %vm518, %v507, %v515
      %v523 = vsel %vm518, %v509, %v501
      %v524 = vsel %vm518, %v511, %v503
      %v525 = vsel %vm518, %v513, %v505
      %v526 = vsel %vm518, %v515, %v507
      %v527 = vlaneseq
      %v528 = vshrl.u32 %v527, 7
      %v529 = vsub.s32 0, %v528
      %v530 = vrot.slane %v326, %v529
      %v531 = vlaneseq
      %v532 = vshrl.u32 %v531, 7
      %v533 = vsub.s32 0, %v532
      %v534 = vrot.slane %v327, %v533
      %v535 = vmul.f32 %v523, %v530
      %v536 = vmul.f32 %v519, %v534
      %v537 = vmul.f32 %v524, %v530
      %v538 = vmul.f32 %v520, %v534
      %v539 = vmul.f32 %v525, %v530
      %v540 = vmul.f32 %v521, %v534
      %v541 = vmul.f32 %v526, %v530
      %v542 = vmul.f32 %v522, %v534
      %543 = vset.pattern.permute.xlu0 0
      %544 = vperm.xlu0 %543, %v312
      %v545 = vpop.permute.xlu0 %544
      %547 = vset.pattern.permute.xlu0 0
      %548 = vperm.xlu0 %547, %v313
      %v549 = vpop.permute.xlu0 %548
      %551 = vset.pattern.permute.xlu0 0
      %552 = vperm.xlu0 %551, %v314
      %v553 = vpop.permute.xlu0 %552
      %555 = vset.pattern.permute.xlu0 0
      %556 = vperm.xlu0 %555, %v315
      %v557 = vpop.permute.xlu0 %556
      %v559 = vmul.f32 %v545, %v535
      %v560 = vmul.f32 %v545, %v536
      %v561 = vmul.f32 %v549, %v537
      %v562 = vmul.f32 %v549, %v538
      %v563 = vmul.f32 %v553, %v539
      %v564 = vmul.f32 %v553, %v540
      %v565 = vmul.f32 %v557, %v541
      %v566 = vmul.f32 %v557, %v542
      %v567 = vadd.f32 %v492, %v559
      %v568 = vadd.f32 %v493, %v560
      %v569 = vadd.f32 %v494, %v561
      %v570 = vadd.f32 %v495, %v562
      %v571 = vadd.f32 %v496, %v563
      %v572 = vadd.f32 %v497, %v564
      %v573 = vadd.f32 %v498, %v565
      %v574 = vadd.f32 %v499, %v566
      %575 = vrot.lane.b32.xlu0 %v464, 16
      %v576 = vpop.permute.xlu0 %575
      %577 = vrot.lane.b32.xlu0 %v466, 16
      %v578 = vpop.permute.xlu0 %577
      %579 = vrot.lane.b32.xlu0 %v468, 16
      %v580 = vpop.permute.xlu0 %579
      %581 = vrot.lane.b32.xlu0 %v470, 16
      %v582 = vpop.permute.xlu0 %581
      %583 = vrot.lane.b32.xlu0 %v465, 16
      %v584 = vpop.permute.xlu0 %583
      %585 = vrot.lane.b32.xlu0 %v467, 16
      %v586 = vpop.permute.xlu0 %585
      %587 = vrot.lane.b32.xlu0 %v469, 16
      %v588 = vpop.permute.xlu0 %587
      %589 = vrot.lane.b32.xlu0 %v471, 16
      %v590 = vpop.permute.xlu0 %589
      %vm591 = vcmp.lt.s32.totalorder %v517, 16
      %v592 = vsel %vm591, %v576, %v584
      %v593 = vsel %vm591, %v578, %v586
      %v594 = vsel %vm591, %v580, %v588
      %v595 = vsel %vm591, %v582, %v590
      %v596 = vsel %vm591, %v584, %v576
      %v597 = vsel %vm591, %v586, %v578
      %v598 = vsel %vm591, %v588, %v580
      %v599 = vsel %vm591, %v590, %v582
      %v600 = vlaneseq
      %v601 = vshrl.u32 %v600, 7
      %v602 = vsub.s32 1, %v601
      %v603 = vrot.slane %v326, %v602
      %v604 = vlaneseq
      %v605 = vshrl.u32 %v604, 7
      %v606 = vsub.s32 1, %v605
      %v607 = vrot.slane %v327, %v606
      %v608 = vmul.f32 %v596, %v603
      %v609 = vmul.f32 %v592, %v607
      %v610 = vmul.f32 %v597, %v603
      %v611 = vmul.f32 %v593, %v607
      %v612 = vmul.f32 %v598, %v603
      %v613 = vmul.f32 %v594, %v607
      %v614 = vmul.f32 %v599, %v603
      %v615 = vmul.f32 %v595, %v607
      %616 = vset.pattern.permute.xlu0 1
      %617 = vperm.xlu0 %616, %v312
      %v618 = vpop.permute.xlu0 %617
      %620 = vset.pattern.permute.xlu0 1
      %621 = vperm.xlu0 %620, %v313
      %v622 = vpop.permute.xlu0 %621
      %624 = vset.pattern.permute.xlu0 1
      %625 = vperm.xlu0 %624, %v314
      %v626 = vpop.permute.xlu0 %625
      %628 = vset.pattern.permute.xlu0 1
      %629 = vperm.xlu0 %628, %v315
      %v630 = vpop.permute.xlu0 %629
      %v632 = vmul.f32 %v618, %v608
      %v633 = vmul.f32 %v618, %v609
      %v634 = vmul.f32 %v622, %v610
      %v635 = vmul.f32 %v622, %v611
      %v636 = vmul.f32 %v626, %v612
      %v637 = vmul.f32 %v626, %v613
      %v638 = vmul.f32 %v630, %v614
      %v639 = vmul.f32 %v630, %v615
      %v640 = vadd.f32 %v567, %v632
      %v641 = vadd.f32 %v568, %v633
      %v642 = vadd.f32 %v569, %v634
      %v643 = vadd.f32 %v570, %v635
      %v644 = vadd.f32 %v571, %v636
      %v645 = vadd.f32 %v572, %v637
      %v646 = vadd.f32 %v573, %v638
      %v647 = vadd.f32 %v574, %v639
      %648 = vrot.lane.b32.xlu0 %v464, 15
      %v649 = vpop.permute.xlu0 %648
      %650 = vrot.lane.b32.xlu0 %v466, 15
      %v651 = vpop.permute.xlu0 %650
      %652 = vrot.lane.b32.xlu0 %v468, 15
      %v653 = vpop.permute.xlu0 %652
      %654 = vrot.lane.b32.xlu0 %v470, 15
      %v655 = vpop.permute.xlu0 %654
      %656 = vrot.lane.b32.xlu0 %v465, 15
      %v657 = vpop.permute.xlu0 %656
      %658 = vrot.lane.b32.xlu0 %v467, 15
      %v659 = vpop.permute.xlu0 %658
      %660 = vrot.lane.b32.xlu0 %v469, 15
      %v661 = vpop.permute.xlu0 %660
      %662 = vrot.lane.b32.xlu0 %v471, 15
      %v663 = vpop.permute.xlu0 %662
      %vm664 = vcmp.lt.s32.totalorder %v517, 15
      %v665 = vsel %vm664, %v649, %v657
      %v666 = vsel %vm664, %v651, %v659
      %v667 = vsel %vm664, %v653, %v661
      %v668 = vsel %vm664, %v655, %v663
      %v669 = vsel %vm664, %v657, %v649
      %v670 = vsel %vm664, %v659, %v651
      %v671 = vsel %vm664, %v661, %v653
      %v672 = vsel %vm664, %v663, %v655
      %v673 = vlaneseq
      %v674 = vshrl.u32 %v673, 7
      %v675 = vsub.s32 2, %v674
      %v676 = vrot.slane %v326, %v675
      %v677 = vlaneseq
      %v678 = vshrl.u32 %v677, 7
      %v679 = vsub.s32 2, %v678
      %v680 = vrot.slane %v327, %v679
      %v681 = vmul.f32 %v669, %v676
      %v682 = vmul.f32 %v665, %v680
      %v683 = vmul.f32 %v670, %v676
      %v684 = vmul.f32 %v666, %v680
      %v685 = vmul.f32 %v671, %v676
      %v686 = vmul.f32 %v667, %v680
      %v687 = vmul.f32 %v672, %v676
      %v688 = vmul.f32 %v668, %v680
      %689 = vset.pattern.permute.xlu0 2
      %690 = vperm.xlu0 %689, %v312
      %v691 = vpop.permute.xlu0 %690
      %693 = vset.pattern.permute.xlu0 2
      %694 = vperm.xlu0 %693, %v313
      %v695 = vpop.permute.xlu0 %694
      %697 = vset.pattern.permute.xlu0 2
      %698 = vperm.xlu0 %697, %v314
      %v699 = vpop.permute.xlu0 %698
      %701 = vset.pattern.permute.xlu0 2
      %702 = vperm.xlu0 %701, %v315
      %v703 = vpop.permute.xlu0 %702
      %v705 = vmul.f32 %v691, %v681
      %v706 = vmul.f32 %v691, %v682
      %v707 = vmul.f32 %v695, %v683
      %v708 = vmul.f32 %v695, %v684
      %v709 = vmul.f32 %v699, %v685
      %v710 = vmul.f32 %v699, %v686
      %v711 = vmul.f32 %v703, %v687
      %v712 = vmul.f32 %v703, %v688
      %v713 = vadd.f32 %v640, %v705
      %v714 = vadd.f32 %v641, %v706
      %v715 = vadd.f32 %v642, %v707
      %v716 = vadd.f32 %v643, %v708
      %v717 = vadd.f32 %v644, %v709
      %v718 = vadd.f32 %v645, %v710
      %v719 = vadd.f32 %v646, %v711
      %v720 = vadd.f32 %v647, %v712
      %721 = vrot.lane.b32.xlu0 %v464, 1
      %v722 = vpop.permute.xlu0 %721
      %723 = vrot.lane.b32.xlu0 %v466, 1
      %v724 = vpop.permute.xlu0 %723
      %725 = vrot.lane.b32.xlu0 %v468, 1
      %v726 = vpop.permute.xlu0 %725
      %727 = vrot.lane.b32.xlu0 %v470, 1
      %v728 = vpop.permute.xlu0 %727
      %729 = vrot.lane.b32.xlu0 %v465, 1
      %v730 = vpop.permute.xlu0 %729
      %731 = vrot.lane.b32.xlu0 %v467, 1
      %v732 = vpop.permute.xlu0 %731
      %733 = vrot.lane.b32.xlu0 %v469, 1
      %v734 = vpop.permute.xlu0 %733
      %735 = vrot.lane.b32.xlu0 %v471, 1
      %v736 = vpop.permute.xlu0 %735
      %vm737 = vcmp.lt.s32.totalorder %v517, 1
      %v738 = vsel %vm737, %v722, %v730
      %v739 = vsel %vm737, %v724, %v732
      %v740 = vsel %vm737, %v726, %v734
      %v741 = vsel %vm737, %v728, %v736
      %v742 = vsel %vm737, %v730, %v722
      %v743 = vsel %vm737, %v732, %v724
      %v744 = vsel %vm737, %v734, %v726
      %v745 = vsel %vm737, %v736, %v728
      %v746 = vlaneseq
      %v747 = vshrl.u32 %v746, 7
      %v748 = vsub.s32 3, %v747
      %v749 = vrot.slane %v326, %v748
      %v750 = vlaneseq
      %v751 = vshrl.u32 %v750, 7
      %v752 = vsub.s32 3, %v751
      %v753 = vrot.slane %v327, %v752
      %v754 = vmul.f32 %v742, %v749
      %v755 = vmul.f32 %v738, %v753
      %v756 = vmul.f32 %v743, %v749
      %v757 = vmul.f32 %v739, %v753
      %v758 = vmul.f32 %v744, %v749
      %v759 = vmul.f32 %v740, %v753
      %v760 = vmul.f32 %v745, %v749
      %v761 = vmul.f32 %v741, %v753
      %762 = vset.pattern.permute.xlu0 3
      %763 = vperm.xlu0 %762, %v312
      %v764 = vpop.permute.xlu0 %763
      %766 = vset.pattern.permute.xlu0 3
      %767 = vperm.xlu0 %766, %v313
      %v768 = vpop.permute.xlu0 %767
      %770 = vset.pattern.permute.xlu0 3
      %771 = vperm.xlu0 %770, %v314
      %v772 = vpop.permute.xlu0 %771
      %774 = vset.pattern.permute.xlu0 3
      %775 = vperm.xlu0 %774, %v315
      %v776 = vpop.permute.xlu0 %775
      %v778 = vmul.f32 %v764, %v754
      %v779 = vmul.f32 %v764, %v755
      %v780 = vmul.f32 %v768, %v756
      %v781 = vmul.f32 %v768, %v757
      %v782 = vmul.f32 %v772, %v758
      %v783 = vmul.f32 %v772, %v759
      %v784 = vmul.f32 %v776, %v760
      %v785 = vmul.f32 %v776, %v761
      %v786 = vadd.f32 %v713, %v778
      %v787 = vadd.f32 %v714, %v779
      %v788 = vadd.f32 %v715, %v780
      %v789 = vadd.f32 %v716, %v781
      %v790 = vadd.f32 %v717, %v782
      %v791 = vadd.f32 %v718, %v783
      %v792 = vadd.f32 %v719, %v784
      %v793 = vadd.f32 %v720, %v785
      %794 = vrot.lane.b32.xlu0 %v464, 127
      %v795 = vpop.permute.xlu0 %794
      %796 = vrot.lane.b32.xlu0 %v466, 127
      %v797 = vpop.permute.xlu0 %796
      %798 = vrot.lane.b32.xlu0 %v468, 127
      %v799 = vpop.permute.xlu0 %798
      %800 = vrot.lane.b32.xlu0 %v470, 127
      %v801 = vpop.permute.xlu0 %800
      %802 = vrot.lane.b32.xlu0 %v465, 127
      %v803 = vpop.permute.xlu0 %802
      %804 = vrot.lane.b32.xlu0 %v467, 127
      %v805 = vpop.permute.xlu0 %804
      %806 = vrot.lane.b32.xlu0 %v469, 127
      %v807 = vpop.permute.xlu0 %806
      %808 = vrot.lane.b32.xlu0 %v471, 127
      %v809 = vpop.permute.xlu0 %808
      %vm810 = vcmp.lt.s32.totalorder %v517, 127
      %v811 = vsel %vm810, %v795, %v803
      %v812 = vsel %vm810, %v797, %v805
      %v813 = vsel %vm810, %v799, %v807
      %v814 = vsel %vm810, %v801, %v809
      %v815 = vsel %vm810, %v803, %v795
      %v816 = vsel %vm810, %v805, %v797
      %v817 = vsel %vm810, %v807, %v799
      %v818 = vsel %vm810, %v809, %v801
      %v819 = vlaneseq
      %v820 = vshrl.u32 %v819, 7
      %v821 = vsub.s32 5, %v820
      %v822 = vrot.slane %v326, %v821
      %v823 = vlaneseq
      %v824 = vshrl.u32 %v823, 7
      %v825 = vsub.s32 5, %v824
      %v826 = vrot.slane %v327, %v825
      %v827 = vmul.f32 %v811, %v822
      %v828 = vmul.f32 %v815, %v826
      %v829 = vmul.f32 %v812, %v822
      %v830 = vmul.f32 %v816, %v826
      %v831 = vmul.f32 %v813, %v822
      %v832 = vmul.f32 %v817, %v826
      %v833 = vmul.f32 %v814, %v822
      %v834 = vmul.f32 %v818, %v826
      %835 = vset.pattern.permute.xlu0 5
      %836 = vperm.xlu0 %835, %v312
      %v837 = vpop.permute.xlu0 %836
      %839 = vset.pattern.permute.xlu0 5
      %840 = vperm.xlu0 %839, %v313
      %v841 = vpop.permute.xlu0 %840
      %843 = vset.pattern.permute.xlu0 5
      %844 = vperm.xlu0 %843, %v314
      %v845 = vpop.permute.xlu0 %844
      %847 = vset.pattern.permute.xlu0 5
      %848 = vperm.xlu0 %847, %v315
      %v849 = vpop.permute.xlu0 %848
      %v851 = vmul.f32 %v837, %v827
      %v852 = vmul.f32 %v837, %v828
      %v853 = vmul.f32 %v841, %v829
      %v854 = vmul.f32 %v841, %v830
      %v855 = vmul.f32 %v845, %v831
      %v856 = vmul.f32 %v845, %v832
      %v857 = vmul.f32 %v849, %v833
      %v858 = vmul.f32 %v849, %v834
      %v859 = vadd.f32 %v786, %v851
      %v860 = vadd.f32 %v787, %v852
      %v861 = vadd.f32 %v788, %v853
      %v862 = vadd.f32 %v789, %v854
      %v863 = vadd.f32 %v790, %v855
      %v864 = vadd.f32 %v791, %v856
      %v865 = vadd.f32 %v792, %v857
      %v866 = vadd.f32 %v793, %v858
      %867 = vrot.lane.b32.xlu0 %v464, 113
      %v868 = vpop.permute.xlu0 %867
      %869 = vrot.lane.b32.xlu0 %v466, 113
      %v870 = vpop.permute.xlu0 %869
      %871 = vrot.lane.b32.xlu0 %v468, 113
      %v872 = vpop.permute.xlu0 %871
      %873 = vrot.lane.b32.xlu0 %v470, 113
      %v874 = vpop.permute.xlu0 %873
      %875 = vrot.lane.b32.xlu0 %v465, 113
      %v876 = vpop.permute.xlu0 %875
      %877 = vrot.lane.b32.xlu0 %v467, 113
      %v878 = vpop.permute.xlu0 %877
      %879 = vrot.lane.b32.xlu0 %v469, 113
      %v880 = vpop.permute.xlu0 %879
      %881 = vrot.lane.b32.xlu0 %v471, 113
      %v882 = vpop.permute.xlu0 %881
      %vm883 = vcmp.lt.s32.totalorder %v517, 113
      %v884 = vsel %vm883, %v868, %v876
      %v885 = vsel %vm883, %v870, %v878
      %v886 = vsel %vm883, %v872, %v880
      %v887 = vsel %vm883, %v874, %v882
      %v888 = vsel %vm883, %v876, %v868
      %v889 = vsel %vm883, %v878, %v870
      %v890 = vsel %vm883, %v880, %v872
      %v891 = vsel %vm883, %v882, %v874
      %v892 = vlaneseq
      %v893 = vshrl.u32 %v892, 7
      %v894 = vsub.s32 6, %v893
      %v895 = vrot.slane %v326, %v894
      %v896 = vlaneseq
      %v897 = vshrl.u32 %v896, 7
      %v898 = vsub.s32 6, %v897
      %v899 = vrot.slane %v327, %v898
      %v900 = vmul.f32 %v884, %v895
      %v901 = vmul.f32 %v888, %v899
      %v902 = vmul.f32 %v885, %v895
      %v903 = vmul.f32 %v889, %v899
      %v904 = vmul.f32 %v886, %v895
      %v905 = vmul.f32 %v890, %v899
      %v906 = vmul.f32 %v887, %v895
      %v907 = vmul.f32 %v891, %v899
      %908 = vset.pattern.permute.xlu0 6
      %909 = vperm.xlu0 %908, %v312
      %v910 = vpop.permute.xlu0 %909
      %912 = vset.pattern.permute.xlu0 6
      %913 = vperm.xlu0 %912, %v313
      %v914 = vpop.permute.xlu0 %913
      %916 = vset.pattern.permute.xlu0 6
      %917 = vperm.xlu0 %916, %v314
      %v918 = vpop.permute.xlu0 %917
      %920 = vset.pattern.permute.xlu0 6
      %921 = vperm.xlu0 %920, %v315
      %v922 = vpop.permute.xlu0 %921
      %v924 = vmul.f32 %v910, %v900
      %v925 = vmul.f32 %v910, %v901
      %v926 = vmul.f32 %v914, %v902
      %v927 = vmul.f32 %v914, %v903
      %v928 = vmul.f32 %v918, %v904
      %v929 = vmul.f32 %v918, %v905
      %v930 = vmul.f32 %v922, %v906
      %v931 = vmul.f32 %v922, %v907
      %v932 = vadd.f32 %v859, %v924
      %v933 = vadd.f32 %v860, %v925
      %v934 = vadd.f32 %v861, %v926
      %v935 = vadd.f32 %v862, %v927
      %v936 = vadd.f32 %v863, %v928
      %v937 = vadd.f32 %v864, %v929
      %v938 = vadd.f32 %v865, %v930
      %v939 = vadd.f32 %v866, %v931
      %940 = vrot.lane.b32.xlu0 %v464, 112
      %v941 = vpop.permute.xlu0 %940
      %942 = vrot.lane.b32.xlu0 %v466, 112
      %v943 = vpop.permute.xlu0 %942
      %944 = vrot.lane.b32.xlu0 %v468, 112
      %v945 = vpop.permute.xlu0 %944
      %946 = vrot.lane.b32.xlu0 %v470, 112
      %v947 = vpop.permute.xlu0 %946
      %948 = vrot.lane.b32.xlu0 %v465, 112
      %v949 = vpop.permute.xlu0 %948
      %950 = vrot.lane.b32.xlu0 %v467, 112
      %v951 = vpop.permute.xlu0 %950
      %952 = vrot.lane.b32.xlu0 %v469, 112
      %v953 = vpop.permute.xlu0 %952
      %954 = vrot.lane.b32.xlu0 %v471, 112
      %v955 = vpop.permute.xlu0 %954
      %vm956 = vcmp.lt.s32.totalorder %v517, 112
      %v957 = vsel %vm956, %v941, %v949
      %v958 = vsel %vm956, %v943, %v951
      %v959 = vsel %vm956, %v945, %v953
      %v960 = vsel %vm956, %v947, %v955
      %v961 = vsel %vm956, %v949, %v941
      %v962 = vsel %vm956, %v951, %v943
      %v963 = vsel %vm956, %v953, %v945
      %v964 = vsel %vm956, %v955, %v947
      %v965 = vlaneseq
      %v966 = vshrl.u32 %v965, 7
      %v967 = vsub.s32 7, %v966
      %v968 = vrot.slane %v326, %v967
      %v969 = vlaneseq
      %v970 = vshrl.u32 %v969, 7
      %v971 = vsub.s32 7, %v970
      %v972 = vrot.slane %v327, %v971
      %v973 = vmul.f32 %v957, %v968
      %v974 = vmul.f32 %v961, %v972
      %v975 = vmul.f32 %v958, %v968
      %v976 = vmul.f32 %v962, %v972
      %v977 = vmul.f32 %v959, %v968
      %v978 = vmul.f32 %v963, %v972
      %v979 = vmul.f32 %v960, %v968
      %v980 = vmul.f32 %v964, %v972
      %981 = vset.pattern.permute.xlu0 7
      %982 = vperm.xlu0 %981, %v312
      %v983 = vpop.permute.xlu0 %982
      %985 = vset.pattern.permute.xlu0 7
      %986 = vperm.xlu0 %985, %v313
      %v987 = vpop.permute.xlu0 %986
      %989 = vset.pattern.permute.xlu0 7
      %990 = vperm.xlu0 %989, %v314
      %v991 = vpop.permute.xlu0 %990
      %993 = vset.pattern.permute.xlu0 7
      %994 = vperm.xlu0 %993, %v315
      %v995 = vpop.permute.xlu0 %994
      %v997 = vmul.f32 %v983, %v973
      %v998 = vmul.f32 %v983, %v974
      %v999 = vmul.f32 %v987, %v975
      %v1000 = vmul.f32 %v987, %v976
      %v1001 = vmul.f32 %v991, %v977
      %v1002 = vmul.f32 %v991, %v978
      %v1003 = vmul.f32 %v995, %v979
      %v1004 = vmul.f32 %v995, %v980
      %v1005 = vadd.f32 %v932, %v997
      %v1006 = vadd.f32 %v933, %v998
      %v1007 = vadd.f32 %v934, %v999
      %v1008 = vadd.f32 %v935, %v1000
      %v1009 = vadd.f32 %v936, %v1001
      %v1010 = vadd.f32 %v937, %v1002
      %v1011 = vadd.f32 %v938, %v1003
      %v1012 = vadd.f32 %v939, %v1004
      %1013 = vrot.lane.b32.xlu0 %v464, 111
      %v1014 = vpop.permute.xlu0 %1013
      %1015 = vrot.lane.b32.xlu0 %v466, 111
      %v1016 = vpop.permute.xlu0 %1015
      %1017 = vrot.lane.b32.xlu0 %v468, 111
      %v1018 = vpop.permute.xlu0 %1017
      %1019 = vrot.lane.b32.xlu0 %v470, 111
      %v1020 = vpop.permute.xlu0 %1019
      %1021 = vrot.lane.b32.xlu0 %v465, 111
      %v1022 = vpop.permute.xlu0 %1021
      %1023 = vrot.lane.b32.xlu0 %v467, 111
      %v1024 = vpop.permute.xlu0 %1023
      %1025 = vrot.lane.b32.xlu0 %v469, 111
      %v1026 = vpop.permute.xlu0 %1025
      %1027 = vrot.lane.b32.xlu0 %v471, 111
      %v1028 = vpop.permute.xlu0 %1027
      %vm1029 = vcmp.lt.s32.totalorder %v517, 111
      %v1030 = vsel %vm1029, %v1014, %v1022
      %v1031 = vsel %vm1029, %v1016, %v1024
      %v1032 = vsel %vm1029, %v1018, %v1026
      %v1033 = vsel %vm1029, %v1020, %v1028
      %v1034 = vsel %vm1029, %v1022, %v1014
      %v1035 = vsel %vm1029, %v1024, %v1016
      %v1036 = vsel %vm1029, %v1026, %v1018
      %v1037 = vsel %vm1029, %v1028, %v1020
      %v1038 = vlaneseq
      %v1039 = vshrl.u32 %v1038, 7
      %v1040 = vsub.s32 0, %v1039
      %v1041 = vrot.slane %v328, %v1040
      %v1042 = vlaneseq
      %v1043 = vshrl.u32 %v1042, 7
      %v1044 = vsub.s32 0, %v1043
      %v1045 = vrot.slane %v329, %v1044
      %v1046 = vmul.f32 %v1030, %v1041
      %v1047 = vmul.f32 %v1034, %v1045
      %v1048 = vmul.f32 %v1031, %v1041
      %v1049 = vmul.f32 %v1035, %v1045
      %v1050 = vmul.f32 %v1032, %v1041
      %v1051 = vmul.f32 %v1036, %v1045
      %v1052 = vmul.f32 %v1033, %v1041
      %v1053 = vmul.f32 %v1037, %v1045
      %1054 = vset.pattern.permute.xlu0 8
      %1055 = vperm.xlu0 %1054, %v312
      %v1056 = vpop.permute.xlu0 %1055
      %1058 = vset.pattern.permute.xlu0 8
      %1059 = vperm.xlu0 %1058, %v313
      %v1060 = vpop.permute.xlu0 %1059
      %1062 = vset.pattern.permute.xlu0 8
      %1063 = vperm.xlu0 %1062, %v314
      %v1064 = vpop.permute.xlu0 %1063
      %1066 = vset.pattern.permute.xlu0 8
      %1067 = vperm.xlu0 %1066, %v315
      %v1068 = vpop.permute.xlu0 %1067
      %v1070 = vmul.f32 %v1056, %v1046
      %v1071 = vmul.f32 %v1056, %v1047
      %v1072 = vmul.f32 %v1060, %v1048
      %v1073 = vmul.f32 %v1060, %v1049
      %v1074 = vmul.f32 %v1064, %v1050
      %v1075 = vmul.f32 %v1064, %v1051
      %v1076 = vmul.f32 %v1068, %v1052
      %v1077 = vmul.f32 %v1068, %v1053
      %v1078 = vadd.f32 %v1005, %v1070
      %v1079 = vadd.f32 %v1006, %v1071
      %v1080 = vadd.f32 %v1007, %v1072
      %v1081 = vadd.f32 %v1008, %v1073
      %v1082 = vadd.f32 %v1009, %v1074
      %v1083 = vadd.f32 %v1010, %v1075
      %v1084 = vadd.f32 %v1011, %v1076
      %v1085 = vadd.f32 %v1012, %v1077
      %1087 = vset.pattern.permute.xlu0 0
      %1088 = vperm.xlu0 %1087, %v320
      %v1089 = vpop.permute.xlu0 %1088
      %1092 = vset.pattern.permute.xlu0 0
      %1093 = vperm.xlu0 %1092, %v321
      %v1094 = vpop.permute.xlu0 %1093
      %1097 = vset.pattern.permute.xlu0 0
      %1098 = vperm.xlu0 %1097, %v322
      %v1099 = vpop.permute.xlu0 %1098
      %1102 = vset.pattern.permute.xlu0 0
      %1103 = vperm.xlu0 %1102, %v323
      %v1104 = vpop.permute.xlu0 %1103
      %v1106 = vadd.f32 %v1078, %v1089
      %v1107 = vadd.f32 %v1079, %v1089
      %v1108 = vadd.f32 %v1080, %v1094
      %v1109 = vadd.f32 %v1081, %v1094
      %v1110 = vadd.f32 %v1082, %v1099
      %v1111 = vadd.f32 %v1083, %v1099
      %v1112 = vadd.f32 %v1084, %v1104
      %v1113 = vadd.f32 %v1085, %v1104
      %v1114 = vmax.f32 %v1106, 0.0
      %v1115 = vmax.f32 %v1107, 0.0
      %v1116 = vmax.f32 %v1108, 0.0
      %v1117 = vmax.f32 %v1109, 0.0
      %v1118 = vmax.f32 %v1110, 0.0
      %v1119 = vmax.f32 %v1111, 0.0
      %v1120 = vmax.f32 %v1112, 0.0
      %v1121 = vmax.f32 %v1113, 0.0
      %v1122 = vmin.f32 %v1114, 6.0
      %v1123 = vmin.f32 %v1115, 6.0
      %v1124 = vmin.f32 %v1116, 6.0
      %v1125 = vmin.f32 %v1117, 6.0
      %v1126 = vmin.f32 %v1118, 6.0
      %v1127 = vmin.f32 %v1119, 6.0
      %v1128 = vmin.f32 %v1120, 6.0
      %v1129 = vmin.f32 %v1121, 6.0
      %1131 = vset.pattern.permute.xlu0 0
      %1132 = vperm.xlu0 %1131, %v324
      %v1133 = vpop.permute.xlu0 %1132
      %1136 = vset.pattern.permute.xlu0 0
      %1137 = vperm.xlu0 %1136, %v325
      %v1138 = vpop.permute.xlu0 %1137
      %vm1140 = vcmask 261120
      %v1142 = vsel %vm1140, %v310, 0
      %v1145 = vsel %vm1140, %v311, 0
      %1147 = vmatprep.subr.mxu0 %v1123
      %1148 = vmatpush1.msra.mxu0 %v1122
      %1149 = vmatprep.subr.mxu0 %v1125
      %1150 = vmatpush1.msra.mxu0 %v1124
      %1151 = vmatprep.subr.mxu0 %v1127
      %1152 = vmatpush1.msra.mxu0 %v1126
      %1153 = vmatprep.subr.mxu0 %v1129
      %1154 = vmatpush1.msra.mxu0 %v1128
      %1155 = vmatprep.subr.mxu0 0.0
      %1156 = vmatpush1.msra.mxu0 0.0
      %1157 = vmatprep.subr.mxu0 0.0
      %1158 = vmatpush1.msra.mxu0 0.0
      %1159 = vmatprep.subr.mxu0 0.0
      %1160 = vmatpush1.msra.mxu0 0.0
      %1161 = vmatprep.subr.mxu0 0.0
      %1162 = vmatpush1.msra.mxu0 0.0
      %1163 = vmatprep.subr.mxu0 0.0
      %1164 = vmatpush1.msra.mxu0 0.0
      %1165 = vmatprep.subr.mxu0 0.0
      %1166 = vmatpush1.msra.mxu0 0.0
      %1167 = vmatprep.subr.mxu0 0.0
      %1168 = vmatpush1.msra.mxu0 0.0
      %1169 = vmatprep.subr.mxu0 0.0
      %1170 = vmatpush1.msra.mxu0 0.0
      %1171 = vmatprep.subr.mxu0 0.0
      %1172 = vmatpush1.msra.mxu0 0.0
      %1173 = vmatprep.subr.mxu0 0.0
      %1174 = vmatpush1.msra.mxu0 0.0
      %1175 = vmatprep.subr.mxu0 0.0
      %1176 = vmatpush1.msra.mxu0 0.0
      %1177 = vmatprep.subr.mxu0 0.0
      %1178 = vmatpush1.msra.mxu0 0.0
      %1179 = vmatprep.subr.mxu0 0.0
      %1180 = vmatpush1.msra.mxu0 0.0
      %1181 = vmatprep.subr.mxu0 0.0
      %1182 = vmatpush1.msra.mxu0 0.0
      %1183 = vmatprep.subr.mxu0 0.0
      %1184 = vmatpush1.msra.mxu0 0.0
      %1185 = vmatprep.subr.mxu0 0.0
      %1186 = vmatpush1.msra.mxu0 0.0
      %1187 = vmatprep.subr.mxu0 0.0
      %1188 = vmatpush1.msra.mxu0 0.0
      %1189 = vmatprep.subr.mxu0 0.0
      %1190 = vmatpush1.msra.mxu0 0.0
      %1191 = vmatprep.subr.mxu0 0.0
      %1192 = vmatpush1.msra.mxu0 0.0
      %1193 = vmatprep.subr.mxu0 0.0
      %1194 = vmatpush1.msra.mxu0 0.0
      %1195 = vmatprep.subr.mxu0 0.0
      %1196 = vmatpush1.msra.mxu0 0.0
      %1197 = vmatprep.subr.mxu0 0.0
      %1198 = vmatpush1.msra.mxu0 0.0
      %1199 = vmatprep.subr.mxu0 0.0
      %1200 = vmatpush1.msra.mxu0 0.0
      %1201 = vmatprep.subr.mxu0 0.0
      %1202 = vmatpush1.msra.mxu0 0.0
      %1203 = vmatprep.subr.mxu0 0.0
      %1204 = vmatpush1.msra.mxu0 0.0
      %1205 = vmatprep.subr.mxu0 0.0
      %1206 = vmatpush1.msra.mxu0 0.0
      %1207 = vmatprep.subr.mxu0 0.0
      %1208 = vmatpush1.msra.mxu0 0.0
      %1209 = vmatprep.subr.mxu0 0.0
      %1210 = vmatpush1.msra.mxu0 0.0
      %1211 = vmatprep.mubr.f32.mxu0 0.0
      %1212 = vmatmul.mubr.f32.gmra.mrb[0].mxu0 %v1142
      %v1213 = vpop.f32.mrb[0].mxu0
      %v1214 = vadd.f32 %v1133, %v1213
      %v1215 = vpop.f32.mrb[0].mxu0
      %v1216 = vadd.f32 %v1133, %v1215
      %1217 = vmatprep.mubr.f32.mxu0 0.0
      %1218 = vmatmul.mubr.f32.gmra.mrb[0].mxu0 %v1145
      %v1219 = vpop.f32.mrb[0].mxu0
      %v1220 = vadd.f32 %v1138, %v1219
      %v1221 = vpop.f32.mrb[0].mxu0
      %v1222 = vadd.f32 %v1138, %v1221
      %1223 = vdwg.mxu0
      %1224 = vst [vmem:[%s305] sm:$0xff] %v330
      %1225 = vst [vmem:[%s305 + $0x8] sm:$0xff] %v331
      %1226 = vst [vmem:[%s305 + $0x10] sm:$0xff] %v332
      %1227 = vst [vmem:[%s305 + $0x18] sm:$0xff] %v333
      %1228 = vst [vmem:[%s305 + $0x20] sm:$0xff] %v1214
      %1229 = vst [vmem:[%s305 + $0x28] sm:$0xff] %v1216
      %1230 = vst [vmem:[%s305 + $0x30] sm:$0xff] %v1220
      %1231 = vst [vmem:[%s305 + $0x38] sm:$0xff] %v1222
      %p1232 = scmp.lt.s32.totalorder %s19, 1
      %s1233 = scalar_select %p1232, %s19, 1
      %s1234 = smul.addr %s1233, 8
      %s1235 = smul.addr %s1234, 8
      %s1236 = scalar_lea.vmem %s8, %s1235
      // Predicated region
      $region53: #{inverted_residual_shuffle.1} parent=51 // pred_check
        %p1237 = pneg %p210
      $region54: #{inverted_residual_shuffle.1} parent=51 // pred_check_branch
        %1239 = sbr.rel (%p1237) target = $region56
      $region55: #{inverted_residual_shuffle.1} parent=51 // pred_region
        _
      $region56: #{inverted_residual_shuffle.1} parent=51 // pred_fallthru
        _
    $region52: #{inverted_residual_shuffle.1} parent=5 // pred_fallthru
      _
    %p1240 = scmp.le.s32.totalorder 2, %s14
    // Predicated region
    $region57: #{inverted_residual_shuffle.1} parent=5 // pred_check
      %p1241 = pneg %p1240
    $region58: #{inverted_residual_shuffle.1} parent=5 // pred_check_branch
      %1243 = sbr.rel (%p1241) target = $region60
    $region59: #{inverted_residual_shuffle.1} parent=5 // pred_region
      %s1244 = ssub.s32 %s14, 2
      // Predicated region
      $region61: #{inverted_residual_shuffle.1} parent=59 // pred_check
        %p1245 = pneg %p216
      $region62: #{inverted_residual_shuffle.1} parent=59 // pred_check_branch
        %1247 = sbr.rel (%p1245) target = $region64
      $region63: #{inverted_residual_shuffle.1} parent=59 // pred_region
        %p1248 = scmp.lt.s32.totalorder %s20, 1
        %s1249 = scalar_select %p1248, %s20, 1
        %s1250 = smul.addr %s1249, 8
        %s1251 = smul.addr %s1250, 8
        %s1252 = scalar_lea.vmem %s8, %s1251
      $region64: #{inverted_residual_shuffle.1} parent=59 // pred_fallthru
        _
    $region60: #{inverted_residual_shuffle.1} parent=5 // pred_fallthru
      _
  $region6: #{inverted_residual_shuffle.1} parent=0 // loop_footer
    %s18 = sadd.s32 1, %s14
  $region7: #{inverted_residual_shuffle.1} parent=0 // loop_footer_branch
    %13 = sbr.rel target = $region3
  $region8: #{inverted_residual_shuffle.1} parent=0 // loop_exit
    _

</llo_original>
